<compile_context>
chip_gen: v5e
topology: v5e:2x2
jax: 0.10.0
libtpu: 0.0.40
codegen_flags: <defaults>
</compile_context>

<pallas_src>
import jax
import jax.numpy as jnp
from jax import lax
from jax.experimental import pallas as pl
from jax.experimental.pallas import tpu as pltpu


def _round_up(x, m):
    return ((x + m - 1) // m) * m


def mlp_kernel(x_ref, w1_ref, b1_ref, w2_ref, b2_ref, o_ref):
    # Hidden pre-activation on the MXU, contracting d_in on the last axis of
    # BOTH operands (w1 @ x_tile^T):  [H, d_in] x [tb, d_in] -> [H, tb].
    # Batch lands on the lane axis, so downstream stores are lane-dense.
    z = lax.dot_general(
        w1_ref[...], x_ref[...],
        dimension_numbers=(((1,), (1,)), ((), ())),
        preferred_element_type=jnp.float32)
    # Bias: [H, 1] column lane-broadcast across the batch.
    z = z + b1_ref[...]
    # Sigmoid as a single EUP transcendental (tanh) + VPU mul/add.
    h = 0.5 * jnp.tanh(0.5 * z) + 0.5
    # N=1 output projection on VPU + XLU (not an MXU [*,H]@[H,1] matmul):
    # broadcast-multiply by the [H, 1] weight column, reduce over sublanes.
    o = jnp.sum(h * w2_ref[...], axis=0, keepdims=True) + b2_ref[...]   # [1, tb]
    o_ref[...] = o.astype(o_ref.dtype)


def mlp_forward(x, w1, b1, w2, b2, *, block_b=8192):
    """Forward pass of MLP(input_size, hidden_size).

    x : [B, d_in]   (rows = samples, matching the PyTorch module)
    w1: [H, d_in], b1: [H]      (input_hidden_layer, PyTorch layout)
    w2: [1, H],    b2: [1]      (output_layer,       PyTorch layout)
    returns [B, 1] float32.
    """
    B, d_in = x.shape
    H = w1.shape[0]

    # ---- Wrapper-side glue (plain JAX): dtype + tiny weight reshapes only.
    # No transpose and no pad of x: it is streamed as-is from HBM.
    x32 = jnp.asarray(x, jnp.float32)
    w1m = jnp.asarray(w1, jnp.float32)                 # [H, d_in] used as-is
    b1c = jnp.asarray(b1, jnp.float32).reshape(H, 1)   # [H, 1] column
    w2c = jnp.asarray(w2, jnp.float32).reshape(H, 1)   # [H, 1] column
    b2r = jnp.asarray(b2, jnp.float32).reshape(1, 1)   # [1, 1]

    # ---- Batch tile choice ----------------------------------------------
    # VMEM-per-sample estimate (f32): double-buffered x tile (d_in lane-padded
    # to 128) + ~2 [H, tb] intermediates (H sublane-padded to 8) + the
    # double-buffered (8-sublane padded) output row.  Cap tb so this stays
    # well inside the explicitly declared 32 MiB limit (safe on v7x's 64 MiB
    # physical VMEM and raises v5e's 16 MiB scoped default).
    lane_pad = _round_up(max(d_in, 1), 128)
    sub_pad = _round_up(H, 8)
    per_sample = 2 * 4 * lane_pad + 2 * 4 * sub_pad + 2 * 4 * 8
    tb_cap = max(128, ((24 * 1024 * 1024) // per_sample) // 128 * 128)

    if B <= 256:
        # Tiny batch: one grid step, full-array blocks (no (8,128) constraint,
        # no per-step pipeline overhead; nothing to shard across cores).
        tb = B
    else:
        # Large batch: 128-aligned lane tiles, at least 2 grid steps so the
        # "parallel" axis can feed both v7x TensorCores.  Last block may be
        # ragged: garbage lanes are per-lane only and the output writeback is
        # clipped to B (there is no cross-lane reduction in the kernel).
        tb = min(block_b, tb_cap, _round_up(pl.cdiv(B, 2), 128))
        tb = max(tb, 128)

    grid = (pl.cdiv(B, tb),)

    cost = pl.CostEstimate(
        flops=2 * B * H * d_in + 2 * B * H,
        transcendentals=B * H,
        bytes_accessed=4 * (B * d_in + B + H * (d_in + 2) + 1),
    )

    out_row = pl.pallas_call(
        mlp_kernel,
        out_shape=jax.ShapeDtypeStruct((1, B), jnp.float32),
        grid_spec=pltpu.PrefetchScalarGridSpec(
            num_scalar_prefetch=0,
            grid=grid,
            in_specs=[
                pl.BlockSpec((tb, d_in), lambda i: (i, 0)),   # x tile (streamed)
                pl.BlockSpec((H, d_in), lambda i: (0, 0)),    # W1 (resident)
                pl.BlockSpec((H, 1), lambda i: (0, 0)),       # b1 column (resident)
                pl.BlockSpec((H, 1), lambda i: (0, 0)),       # w2 column (resident)
                pl.BlockSpec((1, 1), lambda i: (0, 0)),       # b2 scalar (resident)
            ],
            out_specs=pl.BlockSpec((1, tb), lambda i: (0, i)),  # lane-dense row
        ),
        compiler_params=pltpu.CompilerParams(
            dimension_semantics=("parallel",),
            vmem_limit_bytes=32 * 1024 * 1024,
        ),
        cost_estimate=cost,
    )(x32, w1m, b1c, w2c, b2r)

    # Back to the PyTorch-style [B, 1] column (degenerate reshape, cheap).
    return out_row.reshape(B, 1)


def _init_linear(key, out_features, in_features):
    """Deterministic init mimicking torch.nn.Linear's U(-1/sqrt(in), 1/sqrt(in))."""
    kw, kb = jax.random.split(key)
    bound = 1.0 / jnp.sqrt(in_features)
    w = jax.random.uniform(kw, (out_features, in_features), jnp.float32,
                           minval=-bound, maxval=bound)
    b = jax.random.uniform(kb, (out_features,), jnp.float32,
                           minval=-bound, maxval=bound)
    return w, b


if __name__ == "__main__":
    input_size = 4
    hidden_size = 32
    batch = 16

    key = jax.random.PRNGKey(0)
    k_x, k_l1, k_l2 = jax.random.split(key, 3)

    x = jax.random.normal(k_x, (batch, input_size), jnp.float32)
    w1, b1 = _init_linear(k_l1, hidden_size, input_size)     # input_hidden_layer
    w2, b2 = _init_linear(k_l2, 1, hidden_size)               # output_layer

    out = mlp_forward(x, w1, b1, w2, b2)
    out = jax.block_until_ready(out)

    # Reference check in plain JAX (same math as the PyTorch forward).
    ref = jax.nn.sigmoid(x @ w1.T + b1) @ w2.T + b2
    assert out.shape == (batch, 1)
    assert jnp.allclose(out, ref, atol=1e-5, rtol=1e-5)

    print("KERNEL_OK")
</pallas_src>

<mosaic_0001>
module attributes {stable_mosaic.version = 11 : i64} {
  func.func @mlp_kernel(%arg0: i32, %arg1: memref<16x4xf32, #tpu.memory_space<vmem>>, %arg2: memref<32x4xf32, #tpu.memory_space<vmem>>, %arg3: memref<32x1xf32, #tpu.memory_space<vmem>>, %arg4: memref<32x1xf32, #tpu.memory_space<vmem>>, %arg5: memref<1x1xf32, #tpu.memory_space<vmem>>, %arg6: memref<1x16xf32, #tpu.memory_space<vmem>>) attributes {dimension_semantics = [#tpu.dimension_semantics<parallel>], iteration_bounds = array<i64: 1>, scalar_prefetch = 0 : i64, scratch_operands = 0 : i64, tpu.core_type = #tpu.core_type<tc>, window_params = [{transform_indices = @transform_0, window_bounds = array<i64: 16, 4>}, {pipeline_mode = #tpu.pipeline_mode<synchronous>, transform_indices = @transform_1, window_bounds = array<i64: 32, 4>}, {pipeline_mode = #tpu.pipeline_mode<synchronous>, transform_indices = @transform_2, window_bounds = array<i64: 32, 1>}, {pipeline_mode = #tpu.pipeline_mode<synchronous>, transform_indices = @transform_3, window_bounds = array<i64: 32, 1>}, {pipeline_mode = #tpu.pipeline_mode<synchronous>, transform_indices = @transform_4, window_bounds = array<i64: 1, 1>}, {transform_indices = @transform_5, window_bounds = array<i64: 1, 16>}]} {
    %c0 = arith.constant 0 : index
    %c0_0 = arith.constant 0 : index
    %0 = vector.load %arg2[%c0, %c0_0] : memref<32x4xf32, #tpu.memory_space<vmem>>, vector<32x4xf32>
    %c0_1 = arith.constant 0 : index
    %c0_2 = arith.constant 0 : index
    %1 = vector.load %arg1[%c0_1, %c0_2] : memref<16x4xf32, #tpu.memory_space<vmem>>, vector<16x4xf32>
    %cst = arith.constant dense<0.000000e+00> : vector<32x16xf32>
    %2 = tpu.matmul %0, %1, %cst {dimension_numbers = #tpu.dot_dimension_numbers<[1], [1], [0], [0], [0, 0, 1, 0], [], []>} : vector<32x4xf32>, vector<16x4xf32>, vector<32x16xf32> -> vector<32x16xf32>
    %c0_3 = arith.constant 0 : index
    %c0_4 = arith.constant 0 : index
    %3 = vector.load %arg3[%c0_3, %c0_4] : memref<32x1xf32, #tpu.memory_space<vmem>>, vector<32x1xf32>
    %4 = vector.broadcast %3 : vector<32x1xf32> to vector<32x16xf32>
    %5 = arith.addf %2, %4 : vector<32x16xf32>
    %cst_5 = arith.constant 5.000000e-01 : f32
    %6 = vector.broadcast %cst_5 : f32 to vector<32x16xf32>
    %7 = arith.mulf %6, %5 : vector<32x16xf32>
    %8 = math.tanh %7 : vector<32x16xf32>
    %cst_6 = arith.constant 5.000000e-01 : f32
    %9 = vector.broadcast %cst_6 : f32 to vector<32x16xf32>
    %10 = arith.mulf %9, %8 : vector<32x16xf32>
    %cst_7 = arith.constant 5.000000e-01 : f32
    %11 = vector.broadcast %cst_7 : f32 to vector<32x16xf32>
    %12 = arith.addf %10, %11 : vector<32x16xf32>
    %c0_8 = arith.constant 0 : index
    %c0_9 = arith.constant 0 : index
    %13 = vector.load %arg4[%c0_8, %c0_9] : memref<32x1xf32, #tpu.memory_space<vmem>>, vector<32x1xf32>
    %14 = vector.broadcast %13 : vector<32x1xf32> to vector<32x16xf32>
    %15 = arith.mulf %12, %14 : vector<32x16xf32>
    %cst_10 = arith.constant dense<0.000000e+00> : vector<16xf32>
    %16 = vector.multi_reduction <add>, %15, %cst_10 [0] : vector<32x16xf32> to vector<16xf32>
    %17 = vector.shape_cast %16 : vector<16xf32> to vector<1x16xf32>
    %c0_11 = arith.constant 0 : index
    %c0_12 = arith.constant 0 : index
    %18 = vector.load %arg5[%c0_11, %c0_12] : memref<1x1xf32, #tpu.memory_space<vmem>>, vector<1x1xf32>
    %19 = vector.broadcast %18 : vector<1x1xf32> to vector<1x16xf32>
    %20 = arith.addf %17, %19 : vector<1x16xf32>
    %c0_13 = arith.constant 0 : index
    %c0_14 = arith.constant 0 : index
    %21 = vector.load %arg6[%c0_13, %c0_14] : memref<1x16xf32, #tpu.memory_space<vmem>>, vector<1x16xf32>
    tpu.vector_store %arg6[%c0_13, %c0_14], %20 {strides = array<i32>} : memref<1x16xf32, #tpu.memory_space<vmem>>, vector<1x16xf32>,
    return
  }
  func.func @transform_0(%arg0: i32) -> (i32, i32) {
    %c0_i32 = arith.constant 0 : i32
    %c0_i32_0 = arith.constant 0 : i32
    return %arg0, %c0_i32 : i32, i32
  }
  func.func @transform_1(%arg0: i32) -> (i32, i32) {
    %c0_i32 = arith.constant 0 : i32
    %c0_i32_0 = arith.constant 0 : i32
    %c0_i32_1 = arith.constant 0 : i32
    return %c0_i32, %c0_i32_0 : i32, i32
  }
  func.func @transform_2(%arg0: i32) -> (i32, i32) {
    %c0_i32 = arith.constant 0 : i32
    %c0_i32_0 = arith.constant 0 : i32
    %c0_i32_1 = arith.constant 0 : i32
    return %c0_i32, %c0_i32_0 : i32, i32
  }
  func.func @transform_3(%arg0: i32) -> (i32, i32) {
    %c0_i32 = arith.constant 0 : i32
    %c0_i32_0 = arith.constant 0 : i32
    %c0_i32_1 = arith.constant 0 : i32
    return %c0_i32, %c0_i32_0 : i32, i32
  }
  func.func @transform_4(%arg0: i32) -> (i32, i32) {
    %c0_i32 = arith.constant 0 : i32
    %c0_i32_0 = arith.constant 0 : i32
    %c0_i32_1 = arith.constant 0 : i32
    return %c0_i32, %c0_i32_0 : i32, i32
  }
  func.func @transform_5(%arg0: i32) -> (i32, i32) {
    %c0_i32 = arith.constant 0 : i32
    %c0_i32_0 = arith.constant 0 : i32
    return %c0_i32, %arg0 : i32, i32
  }
}

</mosaic_0001>

<llo_original>
// kernel: tpu_custom_call.1
$region0: #{tpu_custom_call.1}
  #allocation0 [shape = 'u32[]', space=smem, size = 0x4, offset = 0x4, fixed_abs, tag = 'smem constant byte address 0x4 - core index']
  #allocation1 [shape = 'u32[72,128]{1,0:T(1,128)}', space=vmem, size = 0x9000, scoped, tag = 'internal scratch']
  #allocation2 [shape = 'f32[1,1]{1,0:T(1,128)S(1)}', space=vmem, size = 0x200, scoped, tag = 'scoped memory for tpu_custom_call.1']
  %s0 = inlined_call_operand.vmem [shape: f32[16,4], index: 0, kind: input, shape index: {}]
  %s1 = inlined_call_operand.vmem [shape: f32[32,4], index: 1, kind: input, shape index: {}]
  %s2 = inlined_call_operand.vmem [shape: f32[32,1], index: 2, kind: input, shape index: {}]
  %s3 = inlined_call_operand.vmem [shape: f32[32,1], index: 3, kind: input, shape index: {}]
  %s4 = inlined_call_operand.<no memory space> [shape: f32[1,1], index: 4, kind: input, shape index: {}]
  %s5 = inlined_call_operand.hbm [shape: f32[1,16], index: 5, kind: output, shape index: {}]
  %s6 = sld [smem:[#allocation0]]
  $region30: #{tpu_custom_call.1} parent=0
    _
  %s8 = ssub.s32 1, %s6
  %s9 = scalar_select 0, %s8, %s6
  %v10 = vstv %s4
  %11 = vst [vmem:[#allocation2] sm:$0x1] %v10
  $region1: #{tpu_custom_call.1} parent=0
    #allocation3 [shape = 'u8[512]{0}', space=vmem, size = 0x400, scoped, tag = 'output window, operand 0, single buffered']
    #allocation4 [shape = 's32[1]{0}', space=sflag, size = 0x4, scoped, tag = 'scoped memory for tpu_custom_call.1']
    %12 = vsyncpa [#allocation4], 0
    // Predicated region
    $region2: #{tpu_custom_call.1} parent=1 // pred_check
      _
    $region3: #{tpu_custom_call.1} parent=1 // pred_check_branch
      %14 = sbr.rel (0) target = $region5
    $region4: #{tpu_custom_call.1} parent=1 // pred_region
      _
    $region5: #{tpu_custom_call.1} parent=1 // pred_fallthru
      _
    // Predicated region
    $region6: #{tpu_custom_call.1} parent=1 // pred_check
      _
    $region7: #{tpu_custom_call.1} parent=1 // pred_check_branch
      %16 = sbr.rel (0) target = $region9
    $region8: #{tpu_custom_call.1} parent=1 // pred_region
      _
    $region9: #{tpu_custom_call.1} parent=1 // pred_fallthru
      _
    // Predicated region
    $region10: #{tpu_custom_call.1} parent=1 // pred_check
      _
    $region11: #{tpu_custom_call.1} parent=1 // pred_check_branch
      %18 = sbr.rel (0) target = $region13
    $region12: #{tpu_custom_call.1} parent=1 // pred_region
      _
    $region13: #{tpu_custom_call.1} parent=1 // pred_fallthru
      _
    // Predicated region
    $region14: #{tpu_custom_call.1} parent=1 // pred_check
      _
    $region15: #{tpu_custom_call.1} parent=1 // pred_check_branch
      %20 = sbr.rel (0) target = $region17
    $region16: #{tpu_custom_call.1} parent=1 // pred_region
      _
    $region17: #{tpu_custom_call.1} parent=1 // pred_fallthru
      _
    // Predicated region
    $region18: #{tpu_custom_call.1} parent=1 // pred_check
      _
    $region19: #{tpu_custom_call.1} parent=1 // pred_check_branch
      %22 = sbr.rel (0) target = $region21
    $region20: #{tpu_custom_call.1} parent=1 // pred_region
      _
    $region21: #{tpu_custom_call.1} parent=1 // pred_fallthru
      _
    %v23 = vld [vmem:[%s1] sm:$0xff]
    %v24 = vld [vmem:[%s1 + $0x8] sm:$0xff]
    %v25 = vld [vmem:[%s1 + $0x10] sm:$0xff]
    %v26 = vld [vmem:[%s1 + $0x18] sm:$0xff]
    %v27 = vld [vmem:[%s0] sm:$0xff]
    %v28 = vld [vmem:[%s0 + $0x8] sm:$0xff]
    %v29 = vld [vmem:[%s2] sm:$0xff]
    %v30 = vld [vmem:[%s2 + $0x8] sm:$0xff]
    %v31 = vld [vmem:[%s2 + $0x10] sm:$0xff]
    %v32 = vld [vmem:[%s2 + $0x18] sm:$0xff]
    %34 = vset.pattern.permute.xlu0 0
    %35 = vperm.xlu0 %34, %v29
    %v36 = vpop.permute.xlu0 %35
    %39 = vset.pattern.permute.xlu0 0
    %40 = vperm.xlu0 %39, %v30
    %v41 = vpop.permute.xlu0 %40
    %44 = vset.pattern.permute.xlu0 0
    %45 = vperm.xlu0 %44, %v31
    %v46 = vpop.permute.xlu0 %45
    %49 = vset.pattern.permute.xlu0 0
    %50 = vperm.xlu0 %49, %v32
    %v51 = vpop.permute.xlu0 %50
    %vm53 = vcmask 31744
    %v55 = vsel %vm53, %v23, 0
    %v58 = vsel %vm53, %v24, 0
    %v61 = vsel %vm53, %v25, 0
    %v64 = vsel %vm53, %v26, 0
    %v67 = vsel %vm53, %v27, 0
    %v70 = vsel %vm53, %v28, 0
    %72 = vmatpush.xpose.msra.mxu0 0.0
    %73 = vmatpush.xpose.msra.mxu0 0.0
    %74 = vmatpush.xpose.msra.mxu0 0.0
    %75 = vmatpush.xpose.msra.mxu0 0.0
    %76 = vmatpush.xpose.msra.mxu0 0.0
    %77 = vmatpush.xpose.msra.mxu0 0.0
    %78 = vmatpush.xpose.msra.mxu0 0.0
    %79 = vmatpush.xpose.msra.mxu0 0.0
    %80 = vmatpush.xpose.msra.mxu0 0.0
    %81 = vmatpush.xpose.msra.mxu0 0.0
    %82 = vmatpush.xpose.msra.mxu0 0.0
    %83 = vmatpush.xpose.msra.mxu0 0.0
    %84 = vmatpush.xpose.msra.mxu0 0.0
    %85 = vmatpush.xpose.msra.mxu0 0.0
    %86 = vmatpush.xpose.msra.mxu0 %v70
    %87 = vmatpush.xpose.msra.mxu0 %v67
    %88 = vmatmul.f32.gmra.mxu0 %v55
    %v89 = vpop.f32.mrf.mxu0
    %v90 = vadd.f32 %v36, %v89
    %91 = vmatmul.f32.gmra.mxu0 %v58
    %v92 = vpop.f32.mrf.mxu0
    %v93 = vadd.f32 %v41, %v92
    %94 = vmatmul.f32.gmra.mxu0 %v61
    %v95 = vpop.f32.mrf.mxu0
    %v96 = vadd.f32 %v46, %v95
    %97 = vmatmul.f32.gmra.mxu0 %v64
    %v98 = vpop.f32.mrf.mxu0
    %v99 = vadd.f32 %v51, %v98
    %100 = vdwg.mxu0
    %v101 = vmul.f32 %v90, 0.5
    %v102 = vmul.f32 %v93, 0.5
    %v103 = vmul.f32 %v96, 0.5
    %v104 = vmul.f32 %v99, 0.5
    %v105 = vtanh.pop %v101
    %v106 = vtanh.pop %v102
    %v107 = vtanh.pop %v103
    %v108 = vtanh.pop %v104
    %v109 = vmul.f32 %v105, 0.5
    %v110 = vmul.f32 %v106, 0.5
    %v111 = vmul.f32 %v107, 0.5
    %v112 = vmul.f32 %v108, 0.5
    %v113 = vadd.f32 %v109, 0.5
    %v114 = vadd.f32 %v110, 0.5
    %v115 = vadd.f32 %v111, 0.5
    %v116 = vadd.f32 %v112, 0.5
    %v117 = vld [vmem:[%s3] sm:$0xff]
    %v118 = vld [vmem:[%s3 + $0x8] sm:$0xff]
    %v119 = vld [vmem:[%s3 + $0x10] sm:$0xff]
    %v120 = vld [vmem:[%s3 + $0x18] sm:$0xff]
    %122 = vset.pattern.permute.xlu0 0
    %123 = vperm.xlu0 %122, %v117
    %v124 = vpop.permute.xlu0 %123
    %127 = vset.pattern.permute.xlu0 0
    %128 = vperm.xlu0 %127, %v118
    %v129 = vpop.permute.xlu0 %128
    %132 = vset.pattern.permute.xlu0 0
    %133 = vperm.xlu0 %132, %v119
    %v134 = vpop.permute.xlu0 %133
    %137 = vset.pattern.permute.xlu0 0
    %138 = vperm.xlu0 %137, %v120
    %v139 = vpop.permute.xlu0 %138
    %v141 = vmul.f32 %v113, %v124
    %v142 = vmul.f32 %v114, %v129
    %v143 = vmul.f32 %v115, %v134
    %v144 = vmul.f32 %v116, %v139
    %vm145 = vcmask 130048
    %v146 = vsel %vm145, %v141, 0.0
    %v147 = vsel %vm145, %v142, 0.0
    %v148 = vadd.f32 %v146, %v147
    %v149 = vsel %vm145, %v143, 0.0
    %v150 = vadd.f32 %v148, %v149
    %v151 = vsel %vm145, %v144, 0.0
    %v152 = vadd.f32 %v150, %v151
    %v153 = vrot.slane %v152, 4
    %v154 = vadd.f32 %v152, %v153
    %v155 = vrot.slane %v154, 2
    %v156 = vadd.f32 %v154, %v155
    %v157 = vrot.slane %v156, 1
    %v158 = vadd.f32 %v156, %v157
    %v159 = vld [vmem:[#allocation2] sm:$0x1]
    %161 = vset.pattern.permute.xlu0 0
    %162 = vperm.xlu0 %161, %v159
    %v163 = vpop.permute.xlu0 %162
    %v165 = vperm.slane %v163, 0
    %v166 = vadd.f32 %v158, %v165
    %vm167 = vcmask 122880
    %168 = vst.msk [vmem:[#allocation3] sm:$0x1] %vm167, %v166
    // Predicated region
    $region22: #{tpu_custom_call.1} parent=1 // pred_check
      _
    $region23: #{tpu_custom_call.1} parent=1 // pred_check_branch
      %170 = sbr.rel (0) target = $region25
    $region24: #{tpu_custom_call.1} parent=1 // pred_region
      %172 = vsyncadd [#allocation4], 0
      %s174 = sshll.u32 [#allocation3], 4
      %s175 = int_to_ptr.vmem [resolvable:$true] %s174
      %s176 = sshll.u32 %s5, 4
      %s177 = int_to_ptr.hbm [resolvable:$true] %s176
      %179 = dma.vmem_to_hbm [thread:$0]  %s175, 16, %s177, [#allocation4]
    $region25: #{tpu_custom_call.1} parent=1 // pred_fallthru
      _
    // Predicated region
    $region26: #{tpu_custom_call.1} parent=1 // pred_check
      _
    $region27: #{tpu_custom_call.1} parent=1 // pred_check_branch
      %181 = sbr.rel (0) target = $region29
    $region28: #{tpu_custom_call.1} parent=1 // pred_region
      %183 = dma.done [#allocation4], 16
    $region29: #{tpu_custom_call.1} parent=1 // pred_fallthru
      _
    %184 = vsyncpa [#allocation4], 1

</llo_original>
